<compile_context>
chip_gen: v5e
topology: v5e:2x2
jax: 0.10.0
libtpu: 0.0.40
codegen_flags: <defaults>
</compile_context>

<pallas_src>
import jax
import jax.numpy as jnp
from jax import lax
from jax.experimental import pallas as pl
from jax.experimental.pallas import tpu as pltpu

FACTOR = round(1.0 / (28 * 28), 3)  # == 0.001, hard-coded exactly like the PyTorch module


def _round_up(x, m):
    return (x + m - 1) // m * m


def _pick_bt(b):
    # Keep at least 2 grid steps (v7x megacore + pipelining); cap Bt at 4 so the
    # per-step VMEM footprint stays small on v7x's 64 MiB VMEM.
    cands = [d for d in range(1, min(b, 4) + 1) if b % d == 0]
    good = [d for d in cands if b // d >= 2]
    return max(good) if good else max(cands)


# ----------------------------- Pallas kernel -------------------------------

def _make_cafc_kernel(n1, n2, n1p, n2p, bt):
    # Compile-time Python scalars only (never jnp arrays -> would be captured
    # constants and break pallas_call tracing).
    factor = float(FACTOR)
    eps2 = 1e-24                 # torch F.normalize eps (1e-12), squared
    col_pad = float(n1p - n1)    # padded rows contribute exp(0)=1 each to column sums
    row_pad = float(n2p - n2)    # padded cols contribute exp(0)=1 each to row sums

    def kernel(fm1_ref, fm2_ref, o1_ref, o2_ref):
        def body(i, carry):
            f1 = fm1_ref[i]   # (Cp, N1p) f32
            f2 = fm2_ref[i]   # (Cp, N2p) f32

            # Channel-wise L2 normalization via rsqrt (multiplies, no divides).
            inv1 = lax.rsqrt(jnp.maximum(jnp.sum(f1 * f1, axis=0, keepdims=True), eps2))
            inv2 = lax.rsqrt(jnp.maximum(jnp.sum(f2 * f2, axis=0, keepdims=True), eps2))
            # Fold the leading "-1" of M into one operand; bf16 operands, f32 acc.
            f1n = (f1 * (-inv1)).astype(jnp.bfloat16)   # (Cp, N1p)
            f2n = (f2 * inv2).astype(jnp.bfloat16)      # (Cp, N2p)

            # M[p, q] = -<f1/||f1||[:,p], f2/||f2||[:,q]>  -> (N1p, N2p)
            # |M| <= ~1.01 (bf16 rounding), so exp(M) cannot overflow:
            # no max-shift, no subtract; the constant shift cancels anyway.
            m = lax.dot_general(f1n, f2n, (((0,), (0,)), ((), ())),
                                preferred_element_type=jnp.float32)
            e = jnp.exp(m)                       # (N1p, N2p) f32
            eb = e.astype(jnp.bfloat16)          # single bf16 copy feeds every dot

            # Softmax denominators on the (otherwise idle) MXU via ones-vector
            # dots: results land directly in the (1, N) layout the outputs need.
            # Padded rows/cols of M are exactly 0 (padded f1n/f2n columns are
            # exactly zero), so each padded element adds exp(0)=1; correct the
            # sums with a scalar subtraction instead of masking the full tile.
            ones1 = jnp.ones((1, n1p), jnp.bfloat16)
            ones2 = jnp.ones((1, n2p), jnp.bfloat16)
            col_sum = lax.dot_general(ones1, eb, (((1,), (0,)), ((), ())),
                                      preferred_element_type=jnp.float32)  # (1, N2p)
            row_sum = lax.dot_general(ones2, eb, (((1,), (1,)), ((), ())),
                                      preferred_element_type=jnp.float32)  # (1, N1p)
            if col_pad:
                col_sum = col_sum - col_pad
            if row_pad:
                row_sum = row_sum - row_pad
            col_scale = factor * pl.reciprocal(col_sum, approx=True)   # (1, N2p)
            row_scale = factor * pl.reciprocal(row_sum, approx=True)   # (1, N1p)

            f1b = f1.astype(jnp.bfloat16)
            f2b = f2.astype(jnp.bfloat16)

            # new_fm2 = factor * fm1 @ softmax_p(M)   == (f1 @ E) * col_scale
            nf2 = lax.dot_general(f1b, eb, (((1,), (0,)), ((), ())),
                                  preferred_element_type=jnp.float32)   # (Cp, N2p)
            o2_ref[i] = (nf2 * col_scale).astype(o2_ref.dtype)

            # new_fm1 = factor * fm2 @ softmax_q(M)^T == (f2 @ E^T) * row_scale
            # (scale applied to the small (Cp, N1p) result, never to full E)
            nf1 = lax.dot_general(f2b, eb, (((1,), (1,)), ((), ())),
                                  preferred_element_type=jnp.float32)   # (Cp, N1p)
            o1_ref[i] = (nf1 * row_scale).astype(o1_ref.dtype)
            return carry

        # fori_loop (not a Python unroll) keeps per-batch-element live ranges
        # bounded; unroll=True keeps LLO scheduler visibility for small bt.
        lax.fori_loop(0, bt, body, 0, unroll=True)

    return kernel


def cafc_core(fm1_flat, fm2_flat):
    """fm1_flat: (B, C, N1), fm2_flat: (B, C, N2) -> ((B,C,N1), (B,C,N2)) f32."""
    b, c, n1 = fm1_flat.shape
    _, _, n2 = fm2_flat.shape

    # Lane-dense / sublane-aligned padding: C -> multiple of 8, N -> multiple of 128.
    # (At production C >= 64-128 the MXU becomes the lever: feed bf16 from the
    # wrapper and pad C toward the MXU width; not worth it at C=4.)
    cp = _round_up(c, 8)
    n1p = _round_up(n1, 128)
    n2p = _round_up(n2, 128)
    f1 = jnp.pad(fm1_flat.astype(jnp.float32), ((0, 0), (0, cp - c), (0, n1p - n1)))
    f2 = jnp.pad(fm2_flat.astype(jnp.float32), ((0, 0), (0, cp - c), (0, n2p - n2)))

    bt = _pick_bt(b)
    grid = (b // bt,)

    # Right-sized VMEM budget: double-buffered in/out blocks + (N1p,N2p) temporaries
    # (f32 E + bf16 E), with 2x slack; clamp to [4 MiB, 64 MiB] (v7x ceiling).
    io_bytes = 2 * 2 * bt * cp * (n1p + n2p) * 4
    tmp_bytes = 2 * bt * n1p * n2p * (4 + 2)
    vmem_limit = min(64 * 1024 * 1024, max(4 * 1024 * 1024, 2 * (io_bytes + tmp_bytes)))

    # TODO(synk): for feature maps much larger than 28x28 the full (N1,N2)
    # exponent matrix should be tiled over N2 (flash-style online softmax);
    # on v7x (64 MiB VMEM) that threshold is ~half the area of v5e/v6e.
    kernel = _make_cafc_kernel(n1, n2, n1p, n2p, bt)
    out_shapes = (jax.ShapeDtypeStruct((b, cp, n1p), jnp.float32),
                  jax.ShapeDtypeStruct((b, cp, n2p), jnp.float32))
    o1, o2 = pl.pallas_call(
        kernel,
        out_shape=out_shapes,
        grid_spec=pltpu.PrefetchScalarGridSpec(
            num_scalar_prefetch=0,
            grid=grid,
            in_specs=[pl.BlockSpec((bt, cp, n1p), lambda i: (i, 0, 0)),
                      pl.BlockSpec((bt, cp, n2p), lambda i: (i, 0, 0))],
            out_specs=[pl.BlockSpec((bt, cp, n1p), lambda i: (i, 0, 0)),
                       pl.BlockSpec((bt, cp, n2p), lambda i: (i, 0, 0))],
        ),
        compiler_params=pltpu.CompilerParams(
            dimension_semantics=("parallel",),
            vmem_limit_bytes=vmem_limit),
    )(f1, f2)
    return o1[:, :c, :n1], o2[:, :c, :n2]


# ------------------------- CoordAtt (plain-JAX glue) ------------------------
# TODO(synk): CoordAtt is referenced but not defined in the provided snippet;
# the standard CoordAtt definition is used here (BN in training mode / batch
# stats, matching a freshly constructed nn.Module called directly).

def init_coordatt_params(key, c, reduction=32):
    mip = max(8, c // reduction)
    k = jax.random.split(key, 6)
    s1 = 1.0 / jnp.sqrt(c)
    s2 = 1.0 / jnp.sqrt(mip)
    return dict(
        w1=jax.random.uniform(k[0], (mip, c), jnp.float32, -s1, s1),
        b1=jax.random.uniform(k[1], (mip,), jnp.float32, -s1, s1),
        gamma=jnp.ones((mip,), jnp.float32),
        beta=jnp.zeros((mip,), jnp.float32),
        wh=jax.random.uniform(k[2], (c, mip), jnp.float32, -s2, s2),
        bh=jax.random.uniform(k[3], (c,), jnp.float32, -s2, s2),
        ww=jax.random.uniform(k[4], (c, mip), jnp.float32, -s2, s2),
        bw=jax.random.uniform(k[5], (c,), jnp.float32, -s2, s2),
    )


def coord_att(x, p):
    # x: (n, c, h, w) NCHW
    n, c, h, w = x.shape
    x_h = jnp.mean(x, axis=3, keepdims=True)                                  # (n,c,h,1)
    x_w = jnp.transpose(jnp.mean(x, axis=2, keepdims=True), (0, 1, 3, 2))     # (n,c,w,1)
    y = jnp.concatenate([x_h, x_w], axis=2)                                   # (n,c,h+w,1)
    y = jnp.einsum('oc,nchw->nohw', p['w1'], y) + p['b1'][None, :, None, None]
    mean = jnp.mean(y, axis=(0, 2, 3), keepdims=True)                         # BN, batch stats
    var = jnp.var(y, axis=(0, 2, 3), keepdims=True)
    y = (y - mean) / jnp.sqrt(var + 1e-5)
    y = y * p['gamma'][None, :, None, None] + p['beta'][None, :, None, None]
    y = y * (jnp.clip(y + 3.0, 0.0, 6.0) / 6.0)                               # h_swish
    y_h = y[:, :, :h, :]
    y_w = jnp.transpose(y[:, :, h:, :], (0, 1, 3, 2))
    a_h = jax.nn.sigmoid(jnp.einsum('oc,nchw->nohw', p['wh'], y_h)
                         + p['bh'][None, :, None, None])
    a_w = jax.nn.sigmoid(jnp.einsum('oc,nchw->nohw', p['ww'], y_w)
                         + p['bw'][None, :, None, None])
    return x * a_w * a_h


# ------------------------------ full forward --------------------------------

def cafc_forward(fm1, fm2, params1, params2):
    b, c, w1, h1 = fm1.shape
    _, _, w2, h2 = fm2.shape
    fm1 = coord_att(fm1, params1)
    fm2 = coord_att(fm2, params2)
    fm1_flat = fm1.reshape(b, c, w1 * h1)
    fm2_flat = fm2.reshape(b, c, w2 * h2)
    new_fm1, new_fm2 = cafc_core(fm1_flat, fm2_flat)
    return new_fm1.reshape(b, c, w1, h1), new_fm2.reshape(b, c, w2, h2)


# pure-JAX f32 reference for the kernelized part (correctness check)
def _cafc_core_ref(f1, f2):
    eps = 1e-12
    f1n = f1 / jnp.maximum(jnp.linalg.norm(f1, axis=1, keepdims=True), eps)
    f2n = f2 / jnp.maximum(jnp.linalg.norm(f2, axis=1, keepdims=True), eps)
    M = -jnp.einsum('bcp,bcq->bpq', f1n, f2n)
    M1 = jax.nn.softmax(M, axis=1)
    M2 = jnp.swapaxes(jax.nn.softmax(M, axis=2), 1, 2)
    new_fm2 = FACTOR * jnp.einsum('bcp,bpq->bcq', f1, M1)
    new_fm1 = FACTOR * jnp.einsum('bcq,bqp->bcp', f2, M2)
    return new_fm1, new_fm2


def _rel_err(a, b):
    return jnp.linalg.norm(a - b) / jnp.maximum(jnp.linalg.norm(b), 1e-30)


if __name__ == "__main__":
    key = jax.random.PRNGKey(0)
    k1, k2, k3, k4 = jax.random.split(key, 4)

    B, C = 2, 4
    W1 = H1 = 16
    W2 = H2 = 8
    fm1 = jax.random.normal(k1, (B, C, W1, H1), jnp.float32)
    fm2 = jax.random.normal(k2, (B, C, W2, H2), jnp.float32)

    p1 = init_coordatt_params(k3, C)
    p2 = init_coordatt_params(k4, C)

    out1, out2 = jax.block_until_ready(cafc_forward(fm1, fm2, p1, p2))
    assert out1.shape == (B, C, W1, H1) and out2.shape == (B, C, W2, H2)

    # verify the Pallas hot path against a pure-JAX f32 reference
    # (bf16 MXU operands + approx reciprocal -> compare with a relative-L2 bound)
    a1 = coord_att(fm1, p1).reshape(B, C, W1 * H1)
    a2 = coord_att(fm2, p2).reshape(B, C, W2 * H2)
    r1, r2 = _cafc_core_ref(a1, a2)
    e1 = _rel_err(out1.reshape(B, C, -1), r1)
    e2 = _rel_err(out2.reshape(B, C, -1), r2)
    assert bool(jnp.isfinite(e1)) and bool(jnp.isfinite(e2))
    assert float(e1) < 2e-2 and float(e2) < 2e-2, (float(e1), float(e2))

    print("KERNEL_OK")
</pallas_src>

<mosaic_0001>
module attributes {stable_mosaic.version = 11 : i64} {
  func.func @kernel(%arg0: i32, %arg1: memref<1x8x256xf32, #tpu.memory_space<vmem>>, %arg2: memref<1x8x128xf32, #tpu.memory_space<vmem>>, %arg3: memref<1x8x256xf32, #tpu.memory_space<vmem>>, %arg4: memref<1x8x128xf32, #tpu.memory_space<vmem>>) attributes {dimension_semantics = [#tpu.dimension_semantics<parallel>], iteration_bounds = array<i64: 2>, scalar_prefetch = 0 : i64, scratch_operands = 0 : i64, tpu.core_type = #tpu.core_type<tc>, window_params = [{transform_indices = @transform_0, window_bounds = array<i64: 1, 8, 256>}, {transform_indices = @transform_1, window_bounds = array<i64: 1, 8, 128>}, {transform_indices = @transform_2, window_bounds = array<i64: 1, 8, 256>}, {transform_indices = @transform_3, window_bounds = array<i64: 1, 8, 128>}]} {
    %c0_i32 = arith.constant 0 : i32
    %0 = arith.index_cast %c0_i32 : i32 to index
    %c0 = arith.constant 0 : index
    %c0_0 = arith.constant 0 : index
    %1 = vector.load %arg1[%0, %c0, %c0_0] : memref<1x8x256xf32, #tpu.memory_space<vmem>>, vector<1x8x256xf32>
    %2 = vector.shape_cast %1 : vector<1x8x256xf32> to vector<8x256xf32>
    %3 = arith.index_cast %c0_i32 : i32 to index
    %c0_1 = arith.constant 0 : index
    %c0_2 = arith.constant 0 : index
    %4 = vector.load %arg2[%3, %c0_1, %c0_2] : memref<1x8x128xf32, #tpu.memory_space<vmem>>, vector<1x8x128xf32>
    %5 = vector.shape_cast %4 : vector<1x8x128xf32> to vector<8x128xf32>
    %6 = arith.mulf %2, %2 : vector<8x256xf32>
    %cst = arith.constant dense<0.000000e+00> : vector<256xf32>
    %7 = vector.multi_reduction <add>, %6, %cst [0] : vector<8x256xf32> to vector<256xf32>
    %8 = vector.shape_cast %7 : vector<256xf32> to vector<1x256xf32>
    %cst_3 = arith.constant 1.000000e-24 : f32
    %9 = vector.broadcast %cst_3 : f32 to vector<1x256xf32>
    %10 = arith.maximumf %8, %9 : vector<1x256xf32>
    %11 = math.rsqrt %10 : vector<1x256xf32>
    %12 = arith.mulf %5, %5 : vector<8x128xf32>
    %cst_4 = arith.constant dense<0.000000e+00> : vector<128xf32>
    %13 = vector.multi_reduction <add>, %12, %cst_4 [0] : vector<8x128xf32> to vector<128xf32>
    %14 = vector.shape_cast %13 : vector<128xf32> to vector<1x128xf32>
    %cst_5 = arith.constant 1.000000e-24 : f32
    %15 = vector.broadcast %cst_5 : f32 to vector<1x128xf32>
    %16 = arith.maximumf %14, %15 : vector<1x128xf32>
    %17 = math.rsqrt %16 : vector<1x128xf32>
    %cst_6 = arith.constant 0.000000e+00 : f32
    %18 = vector.broadcast %cst_6 : f32 to vector<1x256xf32>
    %19 = arith.subf %18, %11 : vector<1x256xf32>
    %20 = vector.broadcast %19 : vector<1x256xf32> to vector<8x256xf32>
    %21 = arith.mulf %2, %20 : vector<8x256xf32>
    %22 = arith.truncf %21 : vector<8x256xf32> to vector<8x256xbf16>
    %23 = vector.broadcast %17 : vector<1x128xf32> to vector<8x128xf32>
    %24 = arith.mulf %5, %23 : vector<8x128xf32>
    %25 = arith.truncf %24 : vector<8x128xf32> to vector<8x128xbf16>
    %cst_7 = arith.constant dense<0.000000e+00> : vector<256x128xf32>
    %26 = tpu.matmul %22, %25, %cst_7 {dimension_numbers = #tpu.dot_dimension_numbers<[0], [0], [1], [1], [0, 1, 1, 1], [], []>} : vector<8x256xbf16>, vector<8x128xbf16>, vector<256x128xf32> -> vector<256x128xf32>
    %27 = math.exp %26 : vector<256x128xf32>
    %28 = arith.truncf %27 : vector<256x128xf32> to vector<256x128xbf16>
    %cst_8 = arith.constant 1.000000e+00 : bf16
    %29 = vector.broadcast %cst_8 : bf16 to vector<1x256xbf16>
    %cst_9 = arith.constant 1.000000e+00 : bf16
    %30 = vector.broadcast %cst_9 : bf16 to vector<1x128xbf16>
    %cst_10 = arith.constant dense<0.000000e+00> : vector<1x128xf32>
    %31 = tpu.matmul %29, %28, %cst_10 {dimension_numbers = #tpu.dot_dimension_numbers<[1], [0], [0], [1], [0, 0, 1, 1], [], []>} : vector<1x256xbf16>, vector<256x128xbf16>, vector<1x128xf32> -> vector<1x128xf32>
    %cst_11 = arith.constant dense<0.000000e+00> : vector<1x256xf32>
    %32 = tpu.matmul %30, %28, %cst_11 {dimension_numbers = #tpu.dot_dimension_numbers<[1], [1], [0], [0], [0, 0, 1, 0], [], []>} : vector<1x128xbf16>, vector<256x128xbf16>, vector<1x256xf32> -> vector<1x256xf32>
    %cst_12 = arith.constant 6.400000e+01 : f32
    %33 = vector.broadcast %cst_12 : f32 to vector<1x256xf32>
    %34 = arith.subf %32, %33 : vector<1x256xf32>
    %35 = tpu.reciprocal %31 {approx = true} : vector<1x128xf32> -> vector<1x128xf32>
    %cst_13 = arith.constant 1.000000e-03 : f32
    %36 = vector.broadcast %cst_13 : f32 to vector<1x128xf32>
    %37 = arith.mulf %36, %35 : vector<1x128xf32>
    %38 = tpu.reciprocal %34 {approx = true} : vector<1x256xf32> -> vector<1x256xf32>
    %cst_14 = arith.constant 1.000000e-03 : f32
    %39 = vector.broadcast %cst_14 : f32 to vector<1x256xf32>
    %40 = arith.mulf %39, %38 : vector<1x256xf32>
    %41 = arith.truncf %2 : vector<8x256xf32> to vector<8x256xbf16>
    %42 = arith.truncf %5 : vector<8x128xf32> to vector<8x128xbf16>
    %cst_15 = arith.constant dense<0.000000e+00> : vector<8x128xf32>
    %43 = tpu.matmul %41, %28, %cst_15 {dimension_numbers = #tpu.dot_dimension_numbers<[1], [0], [0], [1], [0, 0, 1, 1], [], []>} : vector<8x256xbf16>, vector<256x128xbf16>, vector<8x128xf32> -> vector<8x128xf32>
    %44 = vector.broadcast %37 : vector<1x128xf32> to vector<8x128xf32>
    %45 = arith.mulf %43, %44 : vector<8x128xf32>
    %46 = arith.index_cast %c0_i32 : i32 to index
    %c0_16 = arith.constant 0 : index
    %c0_17 = arith.constant 0 : index
    %47 = vector.load %arg4[%46, %c0_16, %c0_17] : memref<1x8x128xf32, #tpu.memory_space<vmem>>, vector<1x8x128xf32>
    %48 = vector.shape_cast %47 : vector<1x8x128xf32> to vector<8x128xf32>
    %49 = vector.shape_cast %45 : vector<8x128xf32> to vector<1x8x128xf32>
    tpu.vector_store %arg4[%46, %c0_16, %c0_17], %49 {strides = array<i32>} : memref<1x8x128xf32, #tpu.memory_space<vmem>>, vector<1x8x128xf32>,
    %cst_18 = arith.constant dense<0.000000e+00> : vector<8x256xf32>
    %50 = tpu.matmul %42, %28, %cst_18 {dimension_numbers = #tpu.dot_dimension_numbers<[1], [1], [0], [0], [0, 0, 1, 0], [], []>} : vector<8x128xbf16>, vector<256x128xbf16>, vector<8x256xf32> -> vector<8x256xf32>
    %51 = vector.broadcast %40 : vector<1x256xf32> to vector<8x256xf32>
    %52 = arith.mulf %50, %51 : vector<8x256xf32>
    %53 = arith.index_cast %c0_i32 : i32 to index
    %c0_19 = arith.constant 0 : index
    %c0_20 = arith.constant 0 : index
    %54 = vector.load %arg3[%53, %c0_19, %c0_20] : memref<1x8x256xf32, #tpu.memory_space<vmem>>, vector<1x8x256xf32>
    %55 = vector.shape_cast %54 : vector<1x8x256xf32> to vector<8x256xf32>
    %56 = vector.shape_cast %52 : vector<8x256xf32> to vector<1x8x256xf32>
    tpu.vector_store %arg3[%53, %c0_19, %c0_20], %56 {strides = array<i32>} : memref<1x8x256xf32, #tpu.memory_space<vmem>>, vector<1x8x256xf32>,
    %c1_i32 = arith.constant 1 : i32
    return
  }
  func.func @transform_0(%arg0: i32) -> (i32, i32, i32) {
    %c0_i32 = arith.constant 0 : i32
    %c0_i32_0 = arith.constant 0 : i32
    %c0_i32_1 = arith.constant 0 : i32
    return %arg0, %c0_i32, %c0_i32_0 : i32, i32, i32
  }
  func.func @transform_1(%arg0: i32) -> (i32, i32, i32) {
    %c0_i32 = arith.constant 0 : i32
    %c0_i32_0 = arith.constant 0 : i32
    %c0_i32_1 = arith.constant 0 : i32
    return %arg0, %c0_i32, %c0_i32_0 : i32, i32, i32
  }
  func.func @transform_2(%arg0: i32) -> (i32, i32, i32) {
    %c0_i32 = arith.constant 0 : i32
    %c0_i32_0 = arith.constant 0 : i32
    %c0_i32_1 = arith.constant 0 : i32
    return %arg0, %c0_i32, %c0_i32_0 : i32, i32, i32
  }
  func.func @transform_3(%arg0: i32) -> (i32, i32, i32) {
    %c0_i32 = arith.constant 0 : i32
    %c0_i32_0 = arith.constant 0 : i32
    %c0_i32_1 = arith.constant 0 : i32
    return %arg0, %c0_i32, %c0_i32_0 : i32, i32, i32
  }
}

</mosaic_0001>

<llo_original>
// kernel: tpu_custom_call.1
$region0: #{tpu_custom_call.1}
  #allocation0 [shape = 'u32[]', space=smem, size = 0x4, offset = 0x4, fixed_abs, tag = 'smem constant byte address 0x4 - core index']
  #allocation1 [shape = 'u32[72,128]{1,0:T(1,128)}', space=vmem, size = 0x9000, scoped, tag = 'internal scratch']
  %s0 = inlined_call_operand.hbm [shape: f32[2,8,256], index: 0, kind: input, shape index: {}]
  %s1 = inlined_call_operand.hbm [shape: f32[2,8,128], index: 1, kind: input, shape index: {}]
  %s2 = inlined_call_operand.hbm [shape: f32[2,8,256], index: 2, kind: output, shape index: {0}]
  %s3 = inlined_call_operand.hbm [shape: f32[2,8,128], index: 3, kind: output, shape index: {1}]
  %4 = xla_tuple %s2, %s3
  %s5 = sld [smem:[#allocation0]]
  $region57: #{tpu_custom_call.1} parent=0
    _
  %s7 = ssub.s32 1, %s5
  %s8 = scalar_select 0, %s7, %s5
  $region1: #{tpu_custom_call.1} parent=0
    #allocation2 [shape = 'u8[16384]{0}', space=vmem, size = 0x4000, scoped, tag = 'input window, operand 0']
    #allocation3 [shape = 's32[2]{0}', space=sflag, size = 0x8, scoped, tag = 'scoped memory for tpu_custom_call.1']
    #allocation4 [shape = 's32[2]{0}', space=sflag, size = 0x8, scoped, tag = 'scoped memory for tpu_custom_call.1']
    #allocation5 [shape = 'u8[8192]{0}', space=vmem, size = 0x2000, scoped, tag = 'input window, operand 1']
    #allocation6 [shape = 's32[2]{0}', space=sflag, size = 0x8, scoped, tag = 'scoped memory for tpu_custom_call.1']
    #allocation7 [shape = 'u8[16384]{0}', space=vmem, size = 0x4000, scoped, tag = 'output window, operand 0']
    #allocation8 [shape = 'u8[8192]{0}', space=vmem, size = 0x2000, scoped, tag = 'output window, operand 1']
    #allocation9 [shape = 's32[2]{0}', space=sflag, size = 0x8, scoped, tag = 'scoped memory for tpu_custom_call.1']
    %9 = vsyncpa [#allocation3], 0
    %s10 = scalar_lea.sflag [#allocation3], 1
    %11 = vsyncpa %s10, 0
    %12 = vsyncpa [#allocation6], 0
    %s13 = scalar_lea.sflag [#allocation6], 1
    %14 = vsyncpa %s13, 0
    %15 = vsyncpa [#allocation4], 0
    %s16 = scalar_lea.sflag [#allocation4], 1
    %17 = vsyncpa %s16, 0
    %18 = vsyncpa [#allocation9], 0
    %s19 = scalar_lea.sflag [#allocation9], 1
    %20 = vsyncpa %s19, 0
    loop: start=0, step=1, limit=4
    $region2: #{tpu_custom_call.1} parent=1 // loop_pre_header
      _
    $region3: #{tpu_custom_call.1} parent=1 // loop_header
      %s22 = sphi 0, %s26
      %p23 = scmp.ge.s32.totalorder %s22, 4
      %s32 = sphi 0, %s34
      %s35 = sphi 0, %s32
      %s36 = sphi 0, %s35
      %s52 = sphi 0, %s36
      %s58 = sphi 0, %s60
      %s61 = sphi 0, %s58
      %s62 = sphi 0, %s61
      %s78 = sphi 0, %s62
      %s84 = sphi 0, %s86
      %s87 = sphi 0, %s84
      %s88 = sphi 0, %s87
      %s104 = sphi 0, %s88
      %s110 = sphi 0, %s112
      %s113 = sphi 0, %s110
      %s114 = sphi 0, %s113
      %s130 = sphi 0, %s114
    $region4: #{tpu_custom_call.1} parent=1 // loop_header_branch
      %25 = sbr.rel (%p23) target = $region8
    $region5: #{tpu_custom_call.1} parent=1 // loop_body
      %s27 = ssub.s32 %s22, 1
      %s28 = ssub.s32 %s22, 2
      %s29 = sadd.s32 %s22, 1
      %s30 = ssub.s32 %s22, %s29
      %p31 = scmp.eq.s32.totalorder %s30, 0
      %s33 = sadd.s32 %s32, 1
      %s34 = scalar_select %p31, %s32, %s33
      %p37 = pneg %p31
      %p38 = scmp.eq.s32.totalorder %s22, 1
      %p39 = por %p37, %p38
      %p40 = scmp.ne.s32.totalorder %s32, %s35
      %p41 = scmp.eq.s32.totalorder %s22, 0
      %p42 = por %p40, %p41
      %p43 = scmp.ne.s32.totalorder %s32, %s35
      %p44 = scmp.eq.s32.totalorder %s27, 1
      %p45 = por %p43, %p44
      %p46 = scmp.ne.s32.totalorder %s35, %s36
      %p47 = scmp.eq.s32.totalorder %s27, 0
      %p48 = por %p46, %p47
      %p49 = scmp.ne.s32.totalorder %s35, %s36
      %p50 = scmp.eq.s32.totalorder %s28, 1
      %p51 = por %p49, %p50
      %p53 = scmp.ne.s32.totalorder %s36, %s52
      %p54 = scmp.eq.s32.totalorder %s28, 0
      %p55 = por %p53, %p54
      %s56 = ssub.s32 %s22, %s29
      %p57 = scmp.eq.s32.totalorder %s56, 0
      %s59 = sadd.s32 %s58, 1
      %s60 = scalar_select %p57, %s58, %s59
      %p63 = pneg %p57
      %p64 = scmp.eq.s32.totalorder %s22, 1
      %p65 = por %p63, %p64
      %p66 = scmp.ne.s32.totalorder %s58, %s61
      %p67 = scmp.eq.s32.totalorder %s22, 0
      %p68 = por %p66, %p67
      %p69 = scmp.ne.s32.totalorder %s58, %s61
      %p70 = scmp.eq.s32.totalorder %s27, 1
      %p71 = por %p69, %p70
      %p72 = scmp.ne.s32.totalorder %s61, %s62
      %p73 = scmp.eq.s32.totalorder %s27, 0
      %p74 = por %p72, %p73
      %p75 = scmp.ne.s32.totalorder %s61, %s62
      %p76 = scmp.eq.s32.totalorder %s28, 1
      %p77 = por %p75, %p76
      %p79 = scmp.ne.s32.totalorder %s62, %s78
      %p80 = scmp.eq.s32.totalorder %s28, 0
      %p81 = por %p79, %p80
      %s82 = ssub.s32 %s22, %s29
      %p83 = scmp.eq.s32.totalorder %s82, 0
      %s85 = sadd.s32 %s84, 1
      %s86 = scalar_select %p83, %s84, %s85
      %p89 = pneg %p83
      %p90 = scmp.eq.s32.totalorder %s22, 1
      %p91 = por %p89, %p90
      %p92 = scmp.ne.s32.totalorder %s84, %s87
      %p93 = scmp.eq.s32.totalorder %s22, 0
      %p94 = por %p92, %p93
      %p95 = scmp.ne.s32.totalorder %s84, %s87
      %p96 = scmp.eq.s32.totalorder %s27, 1
      %p97 = por %p95, %p96
      %p98 = scmp.ne.s32.totalorder %s87, %s88
      %p99 = scmp.eq.s32.totalorder %s27, 0
      %p100 = por %p98, %p99
      %p101 = scmp.ne.s32.totalorder %s87, %s88
      %p102 = scmp.eq.s32.totalorder %s28, 1
      %p103 = por %p101, %p102
      %p105 = scmp.ne.s32.totalorder %s88, %s104
      %p106 = scmp.eq.s32.totalorder %s28, 0
      %p107 = por %p105, %p106
      %s108 = ssub.s32 %s22, %s29
      %p109 = scmp.eq.s32.totalorder %s108, 0
      %s111 = sadd.s32 %s110, 1
      %s112 = scalar_select %p109, %s110, %s111
      %p115 = pneg %p109
      %p116 = scmp.eq.s32.totalorder %s22, 1
      %p117 = por %p115, %p116
      %p118 = scmp.ne.s32.totalorder %s110, %s113
      %p119 = scmp.eq.s32.totalorder %s22, 0
      %p120 = por %p118, %p119
      %p121 = scmp.ne.s32.totalorder %s110, %s113
      %p122 = scmp.eq.s32.totalorder %s27, 1
      %p123 = por %p121, %p122
      %p124 = scmp.ne.s32.totalorder %s113, %s114
      %p125 = scmp.eq.s32.totalorder %s27, 0
      %p126 = por %p124, %p125
      %p127 = scmp.ne.s32.totalorder %s113, %s114
      %p128 = scmp.eq.s32.totalorder %s28, 1
      %p129 = por %p127, %p128
      %p131 = scmp.ne.s32.totalorder %s114, %s130
      %p132 = scmp.eq.s32.totalorder %s28, 0
      %p133 = por %p131, %p132
      %p134 = scmp.le.s32.totalorder 1, %s22
      %p135 = scmp.lt.s32.totalorder %s22, 3
      %p136 = pnand %p134, %p135
      %p137 = pneg %p136
      // Predicated region
      $region9: #{tpu_custom_call.1} parent=5 // pred_check
        _
      $region10: #{tpu_custom_call.1} parent=5 // pred_check_branch
        %139 = sbr.rel (%p136) target = $region12
      $region11: #{tpu_custom_call.1} parent=5 // pred_region
        %s140 = ssub.s32 %s22, 1
      $region12: #{tpu_custom_call.1} parent=5 // pred_fallthru
        _
      %p141 = scmp.lt.s32.totalorder %s22, 2
      // Predicated region
      $region13: #{tpu_custom_call.1} parent=5 // pred_check
        %p142 = pneg %p141
      $region14: #{tpu_custom_call.1} parent=5 // pred_check_branch
        %144 = sbr.rel (%p142) target = $region16
      $region15: #{tpu_custom_call.1} parent=5 // pred_region
        // Predicated region
        $region17: #{tpu_custom_call.1} parent=15 // pred_check
          %p145 = pneg %p42
        $region18: #{tpu_custom_call.1} parent=15 // pred_check_branch
          %147 = sbr.rel (%p145) target = $region20
        $region19: #{tpu_custom_call.1} parent=15 // pred_region
          %s148 = sand.u32 %s32, 1
          %s149 = scalar_lea.sflag [#allocation3], %s148
          %s150 = sand.u32 %s32, 1
          %s151 = smul.addr %s150, 16
          %s152 = scalar_lea.vmem [#allocation2], %s151
          %154 = vsyncadd %s149, 0
          %s155 = smul.addr %s22, 2
          %s156 = smul.addr %s155, 8
          %s157 = scalar_lea.hbm %s0, %s156
          %s159 = sshll.u32 %s157, 4
          %s160 = int_to_ptr.hbm [resolvable:$true] %s159
          %s161 = sshll.u32 %s152, 4
          %s162 = int_to_ptr.vmem [resolvable:$true] %s161
          %164 = dma.hbm_to_vmem [thread:$0]  %s160, 256, %s162, %s149
        $region20: #{tpu_custom_call.1} parent=15 // pred_fallthru
          _
        // Predicated region
        $region21: #{tpu_custom_call.1} parent=15 // pred_check
          %p165 = pneg %p68
        $region22: #{tpu_custom_call.1} parent=15 // pred_check_branch
          %167 = sbr.rel (%p165) target = $region24
        $region23: #{tpu_custom_call.1} parent=15 // pred_region
          %s168 = sand.u32 %s58, 1
          %s169 = scalar_lea.sflag [#allocation6], %s168
          %s170 = sand.u32 %s58, 1
          %s171 = smul.addr %s170, 8
          %s172 = scalar_lea.vmem [#allocation5], %s171
          %174 = vsyncadd %s169, 0
          %s175 = smul.addr %s22, 8
          %s176 = scalar_lea.hbm %s1, %s175
          %s178 = sshll.u32 %s176, 4
          %s179 = int_to_ptr.hbm [resolvable:$true] %s178
          %s180 = sshll.u32 %s172, 4
          %s181 = int_to_ptr.vmem [resolvable:$true] %s180
          %183 = dma.hbm_to_vmem [thread:$0]  %s179, 128, %s181, %s169
        $region24: #{tpu_custom_call.1} parent=15 // pred_fallthru
          _
      $region16: #{tpu_custom_call.1} parent=5 // pred_fallthru
        _
      %p184 = scmp.le.s32.totalorder 1, %s22
      %p185 = scmp.lt.s32.totalorder %s22, 3
      %p186 = pnand %p184, %p185
      %p187 = pneg %p186
      // Predicated region
      $region25: #{tpu_custom_call.1} parent=5 // pred_check
        _
      $region26: #{tpu_custom_call.1} parent=5 // pred_check_branch
        %189 = sbr.rel (%p186) target = $region28
      $region27: #{tpu_custom_call.1} parent=5 // pred_region
        %s190 = ssub.s32 %s22, 1
        %s191 = sand.u32 %s35, 1
        %s192 = scalar_lea.sflag [#allocation3], %s191
        %s193 = sand.u32 %s35, 1
        %s194 = smul.addr %s193, 16
        %s195 = scalar_lea.vmem [#allocation2], %s194
        // Predicated region
        $region29: #{tpu_custom_call.1} parent=27 // pred_check
          %p196 = pneg %p48
        $region30: #{tpu_custom_call.1} parent=27 // pred_check_branch
          %198 = sbr.rel (%p196) target = $region32
        $region31: #{tpu_custom_call.1} parent=27 // pred_region
          %200 = dma.done %s192, 256
        $region32: #{tpu_custom_call.1} parent=27 // pred_fallthru
          _
        %s201 = sand.u32 %s61, 1
        %s202 = scalar_lea.sflag [#allocation6], %s201
        %s203 = sand.u32 %s61, 1
        %s204 = smul.addr %s203, 8
        %s205 = scalar_lea.vmem [#allocation5], %s204
        // Predicated region
        $region33: #{tpu_custom_call.1} parent=27 // pred_check
          %p206 = pneg %p74
        $region34: #{tpu_custom_call.1} parent=27 // pred_check_branch
          %208 = sbr.rel (%p206) target = $region36
        $region35: #{tpu_custom_call.1} parent=27 // pred_region
          %210 = dma.done %s202, 128
        $region36: #{tpu_custom_call.1} parent=27 // pred_fallthru
          _
        %s211 = sand.u32 %s35, 1
        %s212 = scalar_lea.sflag [#allocation3], %s211
        %s213 = sand.u32 %s35, 1
        %s214 = smul.addr %s213, 16
        %s215 = scalar_lea.vmem [#allocation2], %s214
        %p216 = pneg %p48
        %p217 = pneg %p45
        %s218 = sand.u32 %s61, 1
        %s219 = scalar_lea.sflag [#allocation6], %s218
        %s220 = sand.u32 %s61, 1
        %s221 = smul.addr %s220, 8
        %s222 = scalar_lea.vmem [#allocation5], %s221
        %p223 = pneg %p74
        %p224 = pneg %p71
        %p225 = pneg %p100
        %p226 = pneg %p97
        %s227 = sand.u32 %s87, 1
        %s228 = scalar_lea.sflag [#allocation4], %s227
        %s229 = sand.u32 %s87, 1
        %s230 = smul.addr %s229, 16
        %s231 = scalar_lea.vmem [#allocation7], %s230
        %p232 = pneg %p126
        %p233 = pneg %p123
        %s234 = sand.u32 %s113, 1
        %s235 = scalar_lea.sflag [#allocation9], %s234
        %s236 = sand.u32 %s113, 1
        %s237 = smul.addr %s236, 8
        %s238 = scalar_lea.vmem [#allocation8], %s237
        %v241 = vld [vmem:[%s195] sm:$0xff]
        %v242 = vld [vmem:[%s195 + $0x8] sm:$0xff]
        %v243 = vld [vmem:[%s205] sm:$0xff]
        %v244 = vmul.f32 %v241, %v241
        %v245 = vmul.f32 %v242, %v242
        %v246 = vrot.slane %v244, 4
        %v247 = vadd.f32 %v244, %v246
        %v248 = vrot.slane %v247, 2
        %v249 = vadd.f32 %v247, %v248
        %v250 = vrot.slane %v249, 1
        %v251 = vadd.f32 %v249, %v250
        %v252 = vrot.slane %v245, 4
        %v253 = vadd.f32 %v245, %v252
        %v254 = vrot.slane %v253, 2
        %v255 = vadd.f32 %v253, %v254
        %v256 = vrot.slane %v255, 1
        %v257 = vadd.f32 %v255, %v256
        %v258 = vmax.f32 %v251, 1e-24
        %v259 = vmax.f32 %v257, 1e-24
        %v260 = vrsqrt.pop %v258
        %v261 = vmul.f32 %v260, %v258
        %v262 = vmul.f32 %v261, %v260
        %v263 = vmul.f32 0.5, %v262
        %v264 = vsub.f32 1.5, %v263
        %v265 = vmul.f32 %v260, %v264
        %vm266 = vweird.f32 %v258
        %vm267 = vweird.f32 %v260
        %vm268 = vmor %vm266, %vm267
        %v269 = vsel %vm268, %v260, %v265
        %v270 = vrsqrt.pop %v259
        %v271 = vmul.f32 %v270, %v259
        %v272 = vmul.f32 %v271, %v270
        %v273 = vmul.f32 0.5, %v272
        %v274 = vsub.f32 1.5, %v273
        %v275 = vmul.f32 %v270, %v274
        %vm276 = vweird.f32 %v259
        %vm277 = vweird.f32 %v270
        %vm278 = vmor %vm276, %vm277
        %v279 = vsel %vm278, %v270, %v275
        %v280 = vmul.f32 %v243, %v243
        %v281 = vrot.slane %v280, 4
        %v282 = vadd.f32 %v280, %v281
        %v283 = vrot.slane %v282, 2
        %v284 = vadd.f32 %v282, %v283
        %v285 = vrot.slane %v284, 1
        %v286 = vadd.f32 %v284, %v285
        %v287 = vmax.f32 %v286, 1e-24
        %v288 = vrsqrt.pop %v287
        %v289 = vmul.f32 %v288, %v287
        %v290 = vmul.f32 %v289, %v288
        %v291 = vmul.f32 0.5, %v290
        %v292 = vsub.f32 1.5, %v291
        %v293 = vmul.f32 %v288, %v292
        %vm294 = vweird.f32 %v287
        %vm295 = vweird.f32 %v288
        %vm296 = vmor %vm294, %vm295
        %v297 = vsel %vm296, %v288, %v293
        %v298 = vsub.f32 0.0, %v269
        %v299 = vsub.f32 0.0, %v279
        %v300 = vmul.f32 %v241, %v298
        %v301 = vmul.f32 %v242, %v299
        %v302 = vpack.c.bf16 %v300, %v300
        %v303 = vpack.c.bf16 %v301, %v301
        %v304 = vmul.f32 %v243, %v297
        %v305 = vpack.c.bf16 %v304, %v304
        %306 = vxpose.binary.xlu0.c.b16.start [1/16] %v303, %v302, 128
        %307 = vxpose.binary.xlu0.c.b16.cont [2/16] 0, 0, 128
        %308 = vxpose.binary.xlu0.c.b16.cont [3/16] 0, 0, 128
        %309 = vxpose.binary.xlu0.c.b16.cont [4/16] 0, 0, 128
        %310 = vxpose.binary.xlu0.c.b16.cont [5/16] 0, 0, 128
        %311 = vxpose.binary.xlu0.c.b16.cont [6/16] 0, 0, 128
        %312 = vxpose.binary.xlu0.c.b16.cont [7/16] 0, 0, 128
        %313 = vxpose.binary.xlu0.c.b16.end [8/16] 0, 0, 128
        %v314 = vpop.trf.xlu0
        %v315 = vpop.trf.xlu0
        %v316 = vpop.trf.xlu0
        %v317 = vpop.trf.xlu0
        %v318 = vpop.trf.xlu0
        %v319 = vpop.trf.xlu0
        %v320 = vpop.trf.xlu0
        %v321 = vpop.trf.xlu0
        %v322 = vpop.trf.xlu0
        %v323 = vpop.trf.xlu0
        %v324 = vpop.trf.xlu0
        %v325 = vpop.trf.xlu0
        %v326 = vpop.trf.xlu0
        %v327 = vpop.trf.xlu0
        %v328 = vpop.trf.xlu0
        %v329 = vpop.trf.xlu0
        %vm330 = vcmask 64512
        %v332 = vsel %vm330, %v314, 0
        %v335 = vsel %vm330, %v316, 0
        %v338 = vsel %vm330, %v318, 0
        %v341 = vsel %vm330, %v320, 0
        %v344 = vsel %vm330, %v322, 0
        %v347 = vsel %vm330, %v324, 0
        %v350 = vsel %vm330, %v326, 0
        %v353 = vsel %vm330, %v328, 0
        %v356 = vsel %vm330, %v315, 0
        %v359 = vsel %vm330, %v317, 0
        %v362 = vsel %vm330, %v319, 0
        %v365 = vsel %vm330, %v321, 0
        %v368 = vsel %vm330, %v323, 0
        %v371 = vsel %vm330, %v325, 0
        %v374 = vsel %vm330, %v327, 0
        %v377 = vsel %vm330, %v329, 0
        %vm379 = vcmask 1043456
        %v381 = vsel %vm379, %v305, 0
        %383 = vmatpush.bf16.msra.mxu0 0
        %384 = vmatpush.bf16.msra.mxu0 0
        %385 = vmatpush.bf16.msra.mxu0 0
        %386 = vmatpush.bf16.msra.mxu0 0
        %387 = vmatpush.bf16.msra.mxu0 0
        %388 = vmatpush.bf16.msra.mxu0 0
        %389 = vmatpush.bf16.msra.mxu0 0
        %390 = vmatpush.bf16.msra.mxu0 %v381
        %391 = vmatmul.bf16.gmra.mxu0 %v332
        %v392 = vpop.f32.mrf.mxu0
        %v393 = vadd.f32 0.0, %v392
        %v394 = vpop.f32.mrf.mxu0
        %v395 = vadd.f32 0.0, %v394
        %396 = vmatmul.bf16.gmra.mxu0 %v335
        %v397 = vpop.f32.mrf.mxu0
        %v398 = vadd.f32 0.0, %v397
        %v399 = vpop.f32.mrf.mxu0
        %v400 = vadd.f32 0.0, %v399
        %401 = vmatmul.bf16.gmra.mxu0 %v338
        %v402 = vpop.f32.mrf.mxu0
        %v403 = vadd.f32 0.0, %v402
        %v404 = vpop.f32.mrf.mxu0
        %v405 = vadd.f32 0.0, %v404
        %406 = vmatmul.bf16.gmra.mxu0 %v341
        %v407 = vpop.f32.mrf.mxu0
        %v408 = vadd.f32 0.0, %v407
        %v409 = vpop.f32.mrf.mxu0
        %v410 = vadd.f32 0.0, %v409
        %411 = vmatmul.bf16.gmra.mxu0 %v344
        %v412 = vpop.f32.mrf.mxu0
        %v413 = vadd.f32 0.0, %v412
        %v414 = vpop.f32.mrf.mxu0
        %v415 = vadd.f32 0.0, %v414
        %416 = vmatmul.bf16.gmra.mxu0 %v347
        %v417 = vpop.f32.mrf.mxu0
        %v418 = vadd.f32 0.0, %v417
        %v419 = vpop.f32.mrf.mxu0
        %v420 = vadd.f32 0.0, %v419
        %421 = vmatmul.bf16.gmra.mxu0 %v350
        %v422 = vpop.f32.mrf.mxu0
        %v423 = vadd.f32 0.0, %v422
        %v424 = vpop.f32.mrf.mxu0
        %v425 = vadd.f32 0.0, %v424
        %426 = vmatmul.bf16.gmra.mxu0 %v353
        %v427 = vpop.f32.mrf.mxu0
        %v428 = vadd.f32 0.0, %v427
        %v429 = vpop.f32.mrf.mxu0
        %v430 = vadd.f32 0.0, %v429
        %431 = vmatmul.bf16.gmra.mxu0 %v356
        %v432 = vpop.f32.mrf.mxu0
        %v433 = vadd.f32 0.0, %v432
        %v434 = vpop.f32.mrf.mxu0
        %v435 = vadd.f32 0.0, %v434
        %436 = vmatmul.bf16.gmra.mxu0 %v359
        %v437 = vpop.f32.mrf.mxu0
        %v438 = vadd.f32 0.0, %v437
        %v439 = vpop.f32.mrf.mxu0
        %v440 = vadd.f32 0.0, %v439
        %441 = vmatmul.bf16.gmra.mxu0 %v362
        %v442 = vpop.f32.mrf.mxu0
        %v443 = vadd.f32 0.0, %v442
        %v444 = vpop.f32.mrf.mxu0
        %v445 = vadd.f32 0.0, %v444
        %446 = vmatmul.bf16.gmra.mxu0 %v365
        %v447 = vpop.f32.mrf.mxu0
        %v448 = vadd.f32 0.0, %v447
        %v449 = vpop.f32.mrf.mxu0
        %v450 = vadd.f32 0.0, %v449
        %451 = vmatmul.bf16.gmra.mxu0 %v368
        %v452 = vpop.f32.mrf.mxu0
        %v453 = vadd.f32 0.0, %v452
        %v454 = vpop.f32.mrf.mxu0
        %v455 = vadd.f32 0.0, %v454
        %456 = vmatmul.bf16.gmra.mxu0 %v371
        %v457 = vpop.f32.mrf.mxu0
        %v458 = vadd.f32 0.0, %v457
        %v459 = vpop.f32.mrf.mxu0
        %v460 = vadd.f32 0.0, %v459
        %461 = vmatmul.bf16.gmra.mxu0 %v374
        %v462 = vpop.f32.mrf.mxu0
        %v463 = vadd.f32 0.0, %v462
        %v464 = vpop.f32.mrf.mxu0
        %v465 = vadd.f32 0.0, %v464
        %466 = vmatmul.bf16.gmra.mxu0 %v377
        %v467 = vpop.f32.mrf.mxu0
        %v468 = vadd.f32 0.0, %v467
        %v469 = vpop.f32.mrf.mxu0
        %v470 = vadd.f32 0.0, %v469
        %471 = vdwg.mxu0
        %v472 = vmul.f32 %v393, 1.442695
        %v473 = vpow.pop %v472
        %v474 = vmul.f32 %v395, 1.442695
        %v475 = vpow.pop %v474
        %v476 = vmul.f32 %v398, 1.442695
        %v477 = vpow.pop %v476
        %v478 = vmul.f32 %v400, 1.442695
        %v479 = vpow.pop %v478
        %v480 = vmul.f32 %v403, 1.442695
        %v481 = vpow.pop %v480
        %v482 = vmul.f32 %v405, 1.442695
        %v483 = vpow.pop %v482
        %v484 = vmul.f32 %v408, 1.442695
        %v485 = vpow.pop %v484
        %v486 = vmul.f32 %v410, 1.442695
        %v487 = vpow.pop %v486
        %v488 = vmul.f32 %v413, 1.442695
        %v489 = vpow.pop %v488
        %v490 = vmul.f32 %v415, 1.442695
        %v491 = vpow.pop %v490
        %v492 = vmul.f32 %v418, 1.442695
        %v493 = vpow.pop %v492
        %v494 = vmul.f32 %v420, 1.442695
        %v495 = vpow.pop %v494
        %v496 = vmul.f32 %v423, 1.442695
        %v497 = vpow.pop %v496
        %v498 = vmul.f32 %v425, 1.442695
        %v499 = vpow.pop %v498
        %v500 = vmul.f32 %v428, 1.442695
        %v501 = vpow.pop %v500
        %v502 = vmul.f32 %v430, 1.442695
        %v503 = vpow.pop %v502
        %v504 = vmul.f32 %v433, 1.442695
        %v505 = vpow.pop %v504
        %v506 = vmul.f32 %v435, 1.442695
        %v507 = vpow.pop %v506
        %v508 = vmul.f32 %v438, 1.442695
        %v509 = vpow.pop %v508
        %v510 = vmul.f32 %v440, 1.442695
        %v511 = vpow.pop %v510
        %v512 = vmul.f32 %v443, 1.442695
        %v513 = vpow.pop %v512
        %v514 = vmul.f32 %v445, 1.442695
        %v515 = vpow.pop %v514
        %v516 = vmul.f32 %v448, 1.442695
        %v517 = vpow.pop %v516
        %v518 = vmul.f32 %v450, 1.442695
        %v519 = vpow.pop %v518
        %v520 = vmul.f32 %v453, 1.442695
        %v521 = vpow.pop %v520
        %v522 = vmul.f32 %v455, 1.442695
        %v523 = vpow.pop %v522
        %v524 = vmul.f32 %v458, 1.442695
        %v525 = vpow.pop %v524
        %v526 = vmul.f32 %v460, 1.442695
        %v527 = vpow.pop %v526
        %v528 = vmul.f32 %v463, 1.442695
        %v529 = vpow.pop %v528
        %v530 = vmul.f32 %v465, 1.442695
        %v531 = vpow.pop %v530
        %v532 = vmul.f32 %v468, 1.442695
        %v533 = vpow.pop %v532
        %v534 = vmul.f32 %v470, 1.442695
        %v535 = vpow.pop %v534
        %v536 = vpack.c.bf16 %v475, %v473
        %v537 = vpack.c.bf16 %v479, %v477
        %v538 = vpack.c.bf16 %v483, %v481
        %v539 = vpack.c.bf16 %v487, %v485
        %v540 = vpack.c.bf16 %v491, %v489
        %v541 = vpack.c.bf16 %v495, %v493
        %v542 = vpack.c.bf16 %v499, %v497
        %v543 = vpack.c.bf16 %v503, %v501
        %v544 = vpack.c.bf16 %v507, %v505
        %v545 = vpack.c.bf16 %v511, %v509
        %v546 = vpack.c.bf16 %v515, %v513
        %v547 = vpack.c.bf16 %v519, %v517
        %v548 = vpack.c.bf16 %v523, %v521
        %v549 = vpack.c.bf16 %v527, %v525
        %v550 = vpack.c.bf16 %v531, %v529
        %v551 = vpack.c.bf16 %v535, %v533
        %552 = vmatpush.bf16.msra.mxu0 %v543
        %553 = vmatpush.bf16.msra.mxu0 %v542
        %554 = vmatpush.bf16.msra.mxu0 %v541
        %555 = vmatpush.bf16.msra.mxu0 %v540
        %556 = vmatpush.bf16.msra.mxu0 %v539
        %557 = vmatpush.bf16.msra.mxu0 %v538
        %558 = vmatpush.bf16.msra.mxu0 %v537
        %559 = vmatpush.bf16.msra.mxu0 %v536
        %560 = vmatmul.bf16.gmra.mxu0 1065369472
        %v561 = vpop.f32.mrf.mxu0
        %v562 = vadd.f32 0.0, %v561
        %v563 = vpop.f32.mrf.mxu0
        %564 = vdwg.mxu0
        %565 = vmatpush.bf16.msra.mxu0 %v551
        %566 = vmatpush.bf16.msra.mxu0 %v550
        %567 = vmatpush.bf16.msra.mxu0 %v549
        %568 = vmatpush.bf16.msra.mxu0 %v548
        %569 = vmatpush.bf16.msra.mxu0 %v547
        %570 = vmatpush.bf16.msra.mxu0 %v546
        %571 = vmatpush.bf16.msra.mxu0 %v545
        %572 = vmatpush.bf16.msra.mxu0 %v544
        %573 = vmatmul.bf16.gmra.mxu0 1065369472
        %v574 = vpop.f32.mrf.mxu0
        %v575 = vadd.f32 %v562, %v574
        %v576 = vpop.f32.mrf.mxu0
        %577 = vdwg.mxu0
        %578 = vmatpush.bf16.xpose.msra.mxu0 %v543
        %579 = vmatpush.bf16.xpose.msra.mxu0 %v542
        %580 = vmatpush.bf16.xpose.msra.mxu0 %v541
        %581 = vmatpush.bf16.xpose.msra.mxu0 %v540
        %582 = vmatpush.bf16.xpose.msra.mxu0 %v539
        %583 = vmatpush.bf16.xpose.msra.mxu0 %v538
        %584 = vmatpush.bf16.xpose.msra.mxu0 %v537
        %585 = vmatpush.bf16.xpose.msra.mxu0 %v536
        %586 = vmatmul.bf16.gmra.mxu0 1065369472
        %v587 = vpop.f32.mrf.mxu0
        %v588 = vadd.f32 0.0, %v587
        %v589 = vpop.f32.mrf.mxu0
        %590 = vdwg.mxu0
        %591 = vmatpush.bf16.xpose.msra.mxu0 %v551
        %592 = vmatpush.bf16.xpose.msra.mxu0 %v550
        %593 = vmatpush.bf16.xpose.msra.mxu0 %v549
        %594 = vmatpush.bf16.xpose.msra.mxu0 %v548
        %595 = vmatpush.bf16.xpose.msra.mxu0 %v547
        %596 = vmatpush.bf16.xpose.msra.mxu0 %v546
        %597 = vmatpush.bf16.xpose.msra.mxu0 %v545
        %598 = vmatpush.bf16.xpose.msra.mxu0 %v544
        %599 = vmatmul.bf16.gmra.mxu0 1065369472
        %v600 = vpop.f32.mrf.mxu0
        %v601 = vadd.f32 0.0, %v600
        %v602 = vpop.f32.mrf.mxu0
        %603 = vdwg.mxu0
        %v604 = vsub.f32 %v588, 64.0
        %v605 = vsub.f32 %v601, 64.0
        %v606 = vrcp.pop %v575
        %v607 = vmul.f32 %v606, 0.001
        %v608 = vrcp.pop %v604
        %v609 = vrcp.pop %v605
        %v610 = vmul.f32 %v608, 0.001
        %v611 = vmul.f32 %v609, 0.001
        %v612 = vpack.c.bf16 %v241, %v241
        %v613 = vpack.c.bf16 %v242, %v242
        %v614 = vpack.c.bf16 %v243, %v243
        %615 = vmatpush.bf16.msra.mxu0 %v543
        %616 = vmatpush.bf16.msra.mxu0 %v542
        %617 = vmatpush.bf16.msra.mxu0 %v541
        %618 = vmatpush.bf16.msra.mxu0 %v540
        %619 = vmatpush.bf16.msra.mxu0 %v539
        %620 = vmatpush.bf16.msra.mxu0 %v538
        %621 = vmatpush.bf16.msra.mxu0 %v537
        %622 = vmatpush.bf16.msra.mxu0 %v536
        %623 = vmatmul.bf16.gmra.mxu0 %v612
        %v624 = vpop.f32.mrf.mxu0
        %v625 = vadd.f32 0.0, %v624
        %v626 = vpop.f32.mrf.mxu0
        %627 = vdwg.mxu0
        %628 = vmatpush.bf16.msra.mxu0 %v551
        %629 = vmatpush.bf16.msra.mxu0 %v550
        %630 = vmatpush.bf16.msra.mxu0 %v549
        %631 = vmatpush.bf16.msra.mxu0 %v548
        %632 = vmatpush.bf16.msra.mxu0 %v547
        %633 = vmatpush.bf16.msra.mxu0 %v546
        %634 = vmatpush.bf16.msra.mxu0 %v545
        %635 = vmatpush.bf16.msra.mxu0 %v544
        %636 = vmatmul.bf16.gmra.mxu0 %v613
        %v637 = vpop.f32.mrf.mxu0
        %v638 = vadd.f32 %v625, %v637
        %v639 = vpop.f32.mrf.mxu0
        %640 = vdwg.mxu0
        %v641 = vperm.slane %v607, 0
        %v642 = vmul.f32 %v638, %v641
        %643 = vst [vmem:[%s238] sm:$0xff] %v642
        %644 = vmatpush.bf16.xpose.msra.mxu0 %v543
        %645 = vmatpush.bf16.xpose.msra.mxu0 %v542
        %646 = vmatpush.bf16.xpose.msra.mxu0 %v541
        %647 = vmatpush.bf16.xpose.msra.mxu0 %v540
        %648 = vmatpush.bf16.xpose.msra.mxu0 %v539
        %649 = vmatpush.bf16.xpose.msra.mxu0 %v538
        %650 = vmatpush.bf16.xpose.msra.mxu0 %v537
        %651 = vmatpush.bf16.xpose.msra.mxu0 %v536
        %652 = vmatmul.bf16.gmra.mxu0 %v614
        %v653 = vpop.f32.mrf.mxu0
        %v654 = vadd.f32 0.0, %v653
        %v655 = vpop.f32.mrf.mxu0
        %656 = vdwg.mxu0
        %657 = vmatpush.bf16.xpose.msra.mxu0 %v551
        %658 = vmatpush.bf16.xpose.msra.mxu0 %v550
        %659 = vmatpush.bf16.xpose.msra.mxu0 %v549
        %660 = vmatpush.bf16.xpose.msra.mxu0 %v548
        %661 = vmatpush.bf16.xpose.msra.mxu0 %v547
        %662 = vmatpush.bf16.xpose.msra.mxu0 %v546
        %663 = vmatpush.bf16.xpose.msra.mxu0 %v545
        %664 = vmatpush.bf16.xpose.msra.mxu0 %v544
        %665 = vmatmul.bf16.gmra.mxu0 %v614
        %v666 = vpop.f32.mrf.mxu0
        %v667 = vadd.f32 0.0, %v666
        %v668 = vpop.f32.mrf.mxu0
        %669 = vdwg.mxu0
        %v670 = vperm.slane %v610, 0
        %v671 = vperm.slane %v611, 0
        %v672 = vmul.f32 %v654, %v670
        %v673 = vmul.f32 %v667, %v671
        %674 = vst [vmem:[%s231] sm:$0xff] %v672
        %675 = vst [vmem:[%s231 + $0x8] sm:$0xff] %v673
        %s676 = sand.u32 %s87, 1
        %s677 = scalar_lea.sflag [#allocation4], %s676
        %s678 = sand.u32 %s87, 1
        %s679 = smul.addr %s678, 16
        %s680 = scalar_lea.vmem [#allocation7], %s679
        %s681 = sand.u32 %s113, 1
        %s682 = scalar_lea.sflag [#allocation9], %s681
        %s683 = sand.u32 %s113, 1
        %s684 = smul.addr %s683, 8
        %s685 = scalar_lea.vmem [#allocation8], %s684
        // Predicated region
        $region37: #{tpu_custom_call.1} parent=27 // pred_check
          %p686 = pneg %p97
        $region38: #{tpu_custom_call.1} parent=27 // pred_check_branch
          %688 = sbr.rel (%p686) target = $region40
        $region39: #{tpu_custom_call.1} parent=27 // pred_region
          %690 = vsyncadd %s677, 0
          %s691 = smul.addr %s27, 2
          %s692 = smul.addr %s691, 8
          %s693 = scalar_lea.hbm %s2, %s692
          %s695 = sshll.u32 %s680, 4
          %s696 = int_to_ptr.vmem [resolvable:$true] %s695
          %s697 = sshll.u32 %s693, 4
          %s698 = int_to_ptr.hbm [resolvable:$true] %s697
          %700 = dma.vmem_to_hbm [thread:$0]  %s696, 256, %s698, %s677
        $region40: #{tpu_custom_call.1} parent=27 // pred_fallthru
          _
        // Predicated region
        $region41: #{tpu_custom_call.1} parent=27 // pred_check
          %p701 = pneg %p123
        $region42: #{tpu_custom_call.1} parent=27 // pred_check_branch
          %703 = sbr.rel (%p701) target = $region44
        $region43: #{tpu_custom_call.1} parent=27 // pred_region
          %705 = vsyncadd %s682, 0
          %s706 = smul.addr %s27, 8
          %s707 = scalar_lea.hbm %s3, %s706
          %s709 = sshll.u32 %s685, 4
          %s710 = int_to_ptr.vmem [resolvable:$true] %s709
          %s711 = sshll.u32 %s707, 4
          %s712 = int_to_ptr.hbm [resolvable:$true] %s711
          %714 = dma.vmem_to_hbm [thread:$0]  %s710, 128, %s712, %s682
        $region44: #{tpu_custom_call.1} parent=27 // pred_fallthru
          _
      $region28: #{tpu_custom_call.1} parent=5 // pred_fallthru
        _
      %p715 = scmp.le.s32.totalorder 2, %s22
      // Predicated region
      $region45: #{tpu_custom_call.1} parent=5 // pred_check
        %p716 = pneg %p715
      $region46: #{tpu_custom_call.1} parent=5 // pred_check_branch
        %718 = sbr.rel (%p716) target = $region48
      $region47: #{tpu_custom_call.1} parent=5 // pred_region
        %s719 = ssub.s32 %s22, 2
        // Predicated region
        $region49: #{tpu_custom_call.1} parent=47 // pred_check
          %p720 = pneg %p103
        $region50: #{tpu_custom_call.1} parent=47 // pred_check_branch
          %722 = sbr.rel (%p720) target = $region52
        $region51: #{tpu_custom_call.1} parent=47 // pred_region
          %s723 = sand.u32 %s88, 1
          %s724 = scalar_lea.sflag [#allocation4], %s723
          %s725 = sand.u32 %s88, 1
          %s726 = smul.addr %s725, 16
          %s727 = scalar_lea.vmem [#allocation7], %s726
          %729 = dma.done %s724, 256
        $region52: #{tpu_custom_call.1} parent=47 // pred_fallthru
          _
        // Predicated region
        $region53: #{tpu_custom_call.1} parent=47 // pred_check
          %p730 = pneg %p129
        $region54: #{tpu_custom_call.1} parent=47 // pred_check_branch
          %732 = sbr.rel (%p730) target = $region56
        $region55: #{tpu_custom_call.1} parent=47 // pred_region
          %s733 = sand.u32 %s114, 1
          %s734 = scalar_lea.sflag [#allocation9], %s733
          %s735 = sand.u32 %s114, 1
          %s736 = smul.addr %s735, 8
          %s737 = scalar_lea.vmem [#allocation8], %s736
          %739 = dma.done %s734, 128
        $region56: #{tpu_custom_call.1} parent=47 // pred_fallthru
          _
      $region48: #{tpu_custom_call.1} parent=5 // pred_fallthru
        _
    $region6: #{tpu_custom_call.1} parent=1 // loop_footer
      %s26 = sadd.s32 1, %s22
    $region7: #{tpu_custom_call.1} parent=1 // loop_footer_branch
      %21 = sbr.rel target = $region3
    $region8: #{tpu_custom_call.1} parent=1 // loop_exit
      _
    %740 = vsyncpa [#allocation3], 1
    %s741 = scalar_lea.sflag [#allocation3], 1
    %742 = vsyncpa %s741, 1
    %743 = vsyncpa [#allocation6], 1
    %s744 = scalar_lea.sflag [#allocation6], 1
    %745 = vsyncpa %s744, 1
    %746 = vsyncpa [#allocation4], 1
    %s747 = scalar_lea.sflag [#allocation4], 1
    %748 = vsyncpa %s747, 1
    %749 = vsyncpa [#allocation9], 1
    %s750 = scalar_lea.sflag [#allocation9], 1
    %751 = vsyncpa %s750, 1

</llo_original>
